<compile_context>
chip_gen: v7x
topology: tpu7x:2x2x1
jax: 0.10.0
libtpu: 0.0.40
codegen_flags: <defaults>
</compile_context>

<pallas_src>
import functools

import jax
import jax.numpy as jnp
from jax import lax
from jax.experimental import pallas as pl
from jax.experimental.pallas import tpu as pltpu


def _bilstm_mean_kernel(x_ref, w_in_ref, b_in_ref, w_hh_ref, out_ref, *, dim, T):
    """Fused bidirectional LSTM + mean over time on one N-tile.

    x_ref   : (Nb, T*D)    f32  natural concat layout, lane-dense
    w_in_ref: (T*D, T*8H)  f32  input->gates, all steps / both dirs / backward
                                time reversal baked into the block layout
    b_in_ref: (1, T*8H)    f32  combined bias (b_ih + b_hh), tiled per step
    w_hh_ref: (2H, 8H)     f32  block-diagonal hidden->hidden (rows=[h_f|h_b])
    out_ref : (Nb, 2H)     f32  mean_t [h_fwd(t) | h_bwd(t)]
    """
    Nb = x_ref.shape[0]
    H = dim // 2
    H2 = 2 * H                     # packed hidden width (== dim)
    G = 4 * dim                    # 8H = 4 gates x 2 directions (128 lanes @ dim=32)

    # ---- one hoisted input projection for every timestep and both directions
    #      (K = T*D = full 128-lane contraction), bias folded in once. ----
    gx_all = jnp.dot(x_ref[...], w_in_ref[...],
                     preferred_element_type=jnp.float32) + b_in_ref[...]

    w_hh = w_hh_ref[...]

    h = jnp.zeros((Nb, H2), jnp.float32)    # packed [h_fwd | h_bwd]
    c = jnp.zeros((Nb, H2), jnp.float32)    # packed [c_fwd | c_bwd]
    acc = jnp.zeros((Nb, H2), jnp.float32)

    # ---- fused fwd+bwd recurrence, statically unrolled (T small & static) ----
    for s in range(T):
        # one block-diagonal recurrent dot per step for BOTH directions;
        # the gx slice is a 128-lane-aligned static slice (free).
        z = gx_all[:, s * G:(s + 1) * G] + jnp.dot(
            h, w_hh, preferred_element_type=jnp.float32)
        sig = jax.nn.sigmoid(z[:, :3 * H2])    # i, f, o for both dirs: one EUP slab
        g_t = jnp.tanh(z[:, 3 * H2:])          # g for both dirs
        i_t = sig[:, :H2]
        f_t = sig[:, H2:2 * H2]
        o_t = sig[:, 2 * H2:]
        c = f_t * c + i_t * g_t
        h = o_t * jnp.tanh(c)
        acc = acc + h

    # packed [h_fwd | h_bwd] == output layout: single store, no concatenate.
    out_ref[...] = acc * (1.0 / T)


def _prep_weights(params, dim, T):
    """Repack PyTorch-style per-gate LSTM weights into the fused kernel layout.

    Per-step lane layout (8 blocks of width H):
        [ i_f i_b f_f f_b o_f o_b g_f g_b ]
    (gate order reordered from PyTorch (i, f, g, o) to (i, f, o, g) so the
    three sigmoid gates are lane-contiguous).

    The input weight is expanded to (T*D, T*8H): column block s takes its
    forward-direction rows from time block s and its backward-direction rows
    from time block T-1-s, so the backward time reversal costs nothing inside
    the kernel (no per-step select / mask).
    """
    H = dim // 2
    D = dim
    G = 4 * dim
    order = (0, 1, 3, 2)                        # (i, f, g, o) -> (i, f, o, g)
    zer = jnp.zeros((D, H), jnp.float32)

    col_f = jnp.concatenate(
        [w for g in order for w in (params["wih_f"][g], zer)], axis=-1)   # (D, 8H)
    col_b = jnp.concatenate(
        [w for g in order for w in (zer, params["wih_b"][g])], axis=-1)   # (D, 8H)

    rows = []
    for r in range(T):                          # r = time index of x row block
        row_blocks = []
        for s in range(T):                      # s = recurrence step (column block)
            blk = jnp.zeros((D, G), jnp.float32)
            if r == s:
                blk = blk + col_f               # forward gates read x[s]
            if r == T - 1 - s:
                blk = blk + col_b               # backward gates read x[T-1-s]
            row_blocks.append(blk)
        rows.append(jnp.concatenate(row_blocks, axis=1))
    w_in = jnp.concatenate(rows, axis=0)        # (T*D, T*8H)

    b_step = jnp.concatenate(
        [b for g in order for b in (params["b_f"][g], params["b_b"][g])],
        axis=-1)                                # (1, 8H)
    b_in = jnp.tile(b_step, (1, T))             # (1, T*8H)

    zhh = jnp.zeros((H, H), jnp.float32)
    top = jnp.concatenate(
        [w for g in order for w in (params["whh_f"][g], zhh)], axis=-1)   # (H, 8H)
    bot = jnp.concatenate(
        [w for g in order for w in (zhh, params["whh_b"][g])], axis=-1)   # (H, 8H)
    w_hh = jnp.concatenate([top, bot], axis=0)  # (2H, 8H) block-diagonal
    return w_in, b_in, w_hh


def het_content_encoder_forward(h_dict, params, dim, block_n=1024):
    """JAX/Pallas equivalent of het_content_encoder.forward(h_dict)."""
    # glue (plain JAX): concatenate content features. NO transpose — the kernel
    # consumes the natural lane-dense (N, T*dim) layout directly.
    x = jnp.concatenate(list(h_dict.values()), axis=1).astype(jnp.float32)
    N, TD = x.shape
    assert TD % dim == 0, "concatenated feature width must be a multiple of dim"
    T = TD // dim
    G = 4 * dim
    TG = T * G

    w_in, b_in, w_hh = _prep_weights(params, dim, T)

    block_n = min(block_n, N)
    grid = (pl.cdiv(N, block_n),)

    out = pl.pallas_call(
        functools.partial(_bilstm_mean_kernel, dim=dim, T=T),
        out_shape=jax.ShapeDtypeStruct((N, dim), jnp.float32),
        grid=grid,
        in_specs=[
            pl.BlockSpec((block_n, TD), lambda i: (i, 0)),   # x tile: pipelined over N
            pl.BlockSpec((TD, TG), lambda i: (0, 0)),        # weights stay resident
            pl.BlockSpec((1, TG), lambda i: (0, 0)),
            pl.BlockSpec((dim, G), lambda i: (0, 0)),
        ],
        out_specs=pl.BlockSpec((block_n, dim), lambda i: (i, 0)),
        compiler_params=pltpu.CompilerParams(
            dimension_semantics=("parallel",)),   # megacore / v7x 2-TC sharding
    )(x, w_in, b_in, w_hh)

    # torch .squeeze(): only changes shape when N == 1
    return out.squeeze() if N == 1 else out


def reference_forward(h_dict, params, dim):
    """Pure-JAX reference (lax.scan bidirectional LSTM) for validation."""
    concate_embed = jnp.concatenate(list(h_dict.values()), axis=1)
    N = concate_embed.shape[0]
    x = concate_embed.reshape(N, -1, dim).astype(jnp.float32)
    x_tm = jnp.transpose(x, (1, 0, 2))
    H = dim // 2

    def cell(x_t, h, c, wih, whh, b):
        i = jax.nn.sigmoid(x_t @ wih[0] + h @ whh[0] + b[0])
        f = jax.nn.sigmoid(x_t @ wih[1] + h @ whh[1] + b[1])
        g = jnp.tanh(x_t @ wih[2] + h @ whh[2] + b[2])
        o = jax.nn.sigmoid(x_t @ wih[3] + h @ whh[3] + b[3])
        c = f * c + i * g
        h = o * jnp.tanh(c)
        return h, c

    def run(xs, wih, whh, b):
        def step(carry, x_t):
            h, c = carry
            h, c = cell(x_t, h, c, wih, whh, b)
            return (h, c), h
        z = jnp.zeros((N, H), jnp.float32)
        _, hs = lax.scan(step, (z, z), xs)
        return hs  # (T, N, H)

    hs_f = run(x_tm, params["wih_f"], params["whh_f"], params["b_f"])
    hs_b = run(x_tm[::-1], params["wih_b"], params["whh_b"], params["b_b"])
    return jnp.concatenate([hs_f.mean(0), hs_b.mean(0)], axis=-1)


if __name__ == "__main__":
    dim = 32          # LSTM input size
    H = dim // 2      # LSTM hidden size (bidirectional -> output dim = dim)
    N = 8             # number of nodes (batch)

    keys = iter(jax.random.split(jax.random.PRNGKey(0), 16))

    # heterogeneous content features; widths are multiples of dim, concat -> T=4
    h_dict = {
        "feat_a": jax.random.normal(next(keys), (N, dim), jnp.float32),
        "feat_b": jax.random.normal(next(keys), (N, dim), jnp.float32),
        "feat_c": jax.random.normal(next(keys), (N, 2 * dim), jnp.float32),
    }

    # Deterministic LSTM parameters (PyTorch-style uniform(-1/sqrt(H), 1/sqrt(H)))
    bound = 1.0 / (H ** 0.5)

    def u(k, shape):
        return jax.random.uniform(k, shape, jnp.float32, -bound, bound)

    params = {
        "wih_f": u(next(keys), (4, dim, H)),
        "whh_f": u(next(keys), (4, H, H)),
        "b_f":   u(next(keys), (4, 1, H)) + u(next(keys), (4, 1, H)),  # b_ih + b_hh
        "wih_b": u(next(keys), (4, dim, H)),
        "whh_b": u(next(keys), (4, H, H)),
        "b_b":   u(next(keys), (4, 1, H)) + u(next(keys), (4, 1, H)),
    }

    out = het_content_encoder_forward(h_dict, params, dim)
    out = jax.block_until_ready(out)

    ref = reference_forward(h_dict, params, dim)
    assert out.shape == (N, dim), out.shape
    assert jnp.allclose(out, ref, rtol=1e-2, atol=1e-2), float(
        jnp.max(jnp.abs(out - ref)))

    print("KERNEL_OK")
</pallas_src>

<mosaic_0001>
module attributes {stable_mosaic.version = 11 : i64} {
  func.func @_bilstm_mean_kernel(%arg0: i32, %arg1: memref<8x128xf32, #tpu.memory_space<vmem>>, %arg2: memref<128x512xf32, #tpu.memory_space<vmem>>, %arg3: memref<1x512xf32, #tpu.memory_space<vmem>>, %arg4: memref<32x128xf32, #tpu.memory_space<vmem>>, %arg5: memref<8x32xf32, #tpu.memory_space<vmem>>) attributes {dimension_semantics = [#tpu.dimension_semantics<parallel>], iteration_bounds = array<i64: 1>, scalar_prefetch = 0 : i64, scratch_operands = 0 : i64, tpu.core_type = #tpu.core_type<tc>, window_params = [{transform_indices = @transform_0, window_bounds = array<i64: 8, 128>}, {pipeline_mode = #tpu.pipeline_mode<synchronous>, transform_indices = @transform_1, window_bounds = array<i64: 128, 512>}, {pipeline_mode = #tpu.pipeline_mode<synchronous>, transform_indices = @transform_2, window_bounds = array<i64: 1, 512>}, {pipeline_mode = #tpu.pipeline_mode<synchronous>, transform_indices = @transform_3, window_bounds = array<i64: 32, 128>}, {transform_indices = @transform_4, window_bounds = array<i64: 8, 32>}]} {
    %c0 = arith.constant 0 : index
    %c0_0 = arith.constant 0 : index
    %0 = vector.load %arg1[%c0, %c0_0] : memref<8x128xf32, #tpu.memory_space<vmem>>, vector<8x128xf32>
    %c0_1 = arith.constant 0 : index
    %c0_2 = arith.constant 0 : index
    %1 = vector.load %arg2[%c0_1, %c0_2] : memref<128x512xf32, #tpu.memory_space<vmem>>, vector<128x512xf32>
    %cst = arith.constant dense<0.000000e+00> : vector<8x512xf32>
    %2 = tpu.matmul %0, %1, %cst {dimension_numbers = #tpu.dot_dimension_numbers<[1], [0], [0], [1], [0, 0, 1, 1], [], []>} : vector<8x128xf32>, vector<128x512xf32>, vector<8x512xf32> -> vector<8x512xf32>
    %c0_3 = arith.constant 0 : index
    %c0_4 = arith.constant 0 : index
    %3 = vector.load %arg3[%c0_3, %c0_4] : memref<1x512xf32, #tpu.memory_space<vmem>>, vector<1x512xf32>
    %4 = vector.broadcast %3 : vector<1x512xf32> to vector<8x512xf32>
    %5 = arith.addf %2, %4 : vector<8x512xf32>
    %c0_5 = arith.constant 0 : index
    %c0_6 = arith.constant 0 : index
    %6 = vector.load %arg4[%c0_5, %c0_6] : memref<32x128xf32, #tpu.memory_space<vmem>>, vector<32x128xf32>
    %cst_7 = arith.constant 0.000000e+00 : f32
    %7 = vector.broadcast %cst_7 : f32 to vector<8x32xf32>
    %cst_8 = arith.constant 0.000000e+00 : f32
    %8 = vector.broadcast %cst_8 : f32 to vector<8x32xf32>
    %cst_9 = arith.constant 0.000000e+00 : f32
    %9 = vector.broadcast %cst_9 : f32 to vector<8x32xf32>
    %10 = vector.extract_strided_slice %5 {offsets = [0, 0], sizes = [8, 128], strides = [1, 1]} : vector<8x512xf32> to vector<8x128xf32>
    %cst_10 = arith.constant dense<0.000000e+00> : vector<8x128xf32>
    %11 = tpu.matmul %7, %6, %cst_10 {dimension_numbers = #tpu.dot_dimension_numbers<[1], [0], [0], [1], [0, 0, 1, 1], [], []>} : vector<8x32xf32>, vector<32x128xf32>, vector<8x128xf32> -> vector<8x128xf32>
    %12 = arith.addf %10, %11 : vector<8x128xf32>
    %13 = vector.extract_strided_slice %12 {offsets = [0, 0], sizes = [8, 96], strides = [1, 1]} : vector<8x128xf32> to vector<8x96xf32>
    %14 = arith.negf %13 : vector<8x96xf32>
    %15 = math.exp %14 : vector<8x96xf32>
    %cst_11 = arith.constant 1.000000e+00 : f32
    %16 = vector.broadcast %cst_11 : f32 to vector<8x96xf32>
    %17 = arith.addf %16, %15 : vector<8x96xf32>
    %18 = arith.divf %16, %17 : vector<8x96xf32>
    %19 = vector.extract_strided_slice %12 {offsets = [0, 96], sizes = [8, 32], strides = [1, 1]} : vector<8x128xf32> to vector<8x32xf32>
    %20 = math.tanh %19 : vector<8x32xf32>
    %21 = vector.extract_strided_slice %18 {offsets = [0, 0], sizes = [8, 32], strides = [1, 1]} : vector<8x96xf32> to vector<8x32xf32>
    %22 = vector.extract_strided_slice %18 {offsets = [0, 32], sizes = [8, 32], strides = [1, 1]} : vector<8x96xf32> to vector<8x32xf32>
    %23 = vector.extract_strided_slice %18 {offsets = [0, 64], sizes = [8, 32], strides = [1, 1]} : vector<8x96xf32> to vector<8x32xf32>
    %24 = arith.mulf %22, %8 : vector<8x32xf32>
    %25 = arith.mulf %21, %20 : vector<8x32xf32>
    %26 = arith.addf %24, %25 : vector<8x32xf32>
    %27 = math.tanh %26 : vector<8x32xf32>
    %28 = arith.mulf %23, %27 : vector<8x32xf32>
    %29 = arith.addf %9, %28 : vector<8x32xf32>
    %30 = vector.extract_strided_slice %5 {offsets = [0, 128], sizes = [8, 128], strides = [1, 1]} : vector<8x512xf32> to vector<8x128xf32>
    %cst_12 = arith.constant dense<0.000000e+00> : vector<8x128xf32>
    %31 = tpu.matmul %28, %6, %cst_12 {dimension_numbers = #tpu.dot_dimension_numbers<[1], [0], [0], [1], [0, 0, 1, 1], [], []>} : vector<8x32xf32>, vector<32x128xf32>, vector<8x128xf32> -> vector<8x128xf32>
    %32 = arith.addf %30, %31 : vector<8x128xf32>
    %33 = vector.extract_strided_slice %32 {offsets = [0, 0], sizes = [8, 96], strides = [1, 1]} : vector<8x128xf32> to vector<8x96xf32>
    %34 = arith.negf %33 : vector<8x96xf32>
    %35 = math.exp %34 : vector<8x96xf32>
    %cst_13 = arith.constant 1.000000e+00 : f32
    %36 = vector.broadcast %cst_13 : f32 to vector<8x96xf32>
    %37 = arith.addf %36, %35 : vector<8x96xf32>
    %38 = arith.divf %36, %37 : vector<8x96xf32>
    %39 = vector.extract_strided_slice %32 {offsets = [0, 96], sizes = [8, 32], strides = [1, 1]} : vector<8x128xf32> to vector<8x32xf32>
    %40 = math.tanh %39 : vector<8x32xf32>
    %41 = vector.extract_strided_slice %38 {offsets = [0, 0], sizes = [8, 32], strides = [1, 1]} : vector<8x96xf32> to vector<8x32xf32>
    %42 = vector.extract_strided_slice %38 {offsets = [0, 32], sizes = [8, 32], strides = [1, 1]} : vector<8x96xf32> to vector<8x32xf32>
    %43 = vector.extract_strided_slice %38 {offsets = [0, 64], sizes = [8, 32], strides = [1, 1]} : vector<8x96xf32> to vector<8x32xf32>
    %44 = arith.mulf %42, %26 : vector<8x32xf32>
    %45 = arith.mulf %41, %40 : vector<8x32xf32>
    %46 = arith.addf %44, %45 : vector<8x32xf32>
    %47 = math.tanh %46 : vector<8x32xf32>
    %48 = arith.mulf %43, %47 : vector<8x32xf32>
    %49 = arith.addf %29, %48 : vector<8x32xf32>
    %50 = vector.extract_strided_slice %5 {offsets = [0, 256], sizes = [8, 128], strides = [1, 1]} : vector<8x512xf32> to vector<8x128xf32>
    %cst_14 = arith.constant dense<0.000000e+00> : vector<8x128xf32>
    %51 = tpu.matmul %48, %6, %cst_14 {dimension_numbers = #tpu.dot_dimension_numbers<[1], [0], [0], [1], [0, 0, 1, 1], [], []>} : vector<8x32xf32>, vector<32x128xf32>, vector<8x128xf32> -> vector<8x128xf32>
    %52 = arith.addf %50, %51 : vector<8x128xf32>
    %53 = vector.extract_strided_slice %52 {offsets = [0, 0], sizes = [8, 96], strides = [1, 1]} : vector<8x128xf32> to vector<8x96xf32>
    %54 = arith.negf %53 : vector<8x96xf32>
    %55 = math.exp %54 : vector<8x96xf32>
    %cst_15 = arith.constant 1.000000e+00 : f32
    %56 = vector.broadcast %cst_15 : f32 to vector<8x96xf32>
    %57 = arith.addf %56, %55 : vector<8x96xf32>
    %58 = arith.divf %56, %57 : vector<8x96xf32>
    %59 = vector.extract_strided_slice %52 {offsets = [0, 96], sizes = [8, 32], strides = [1, 1]} : vector<8x128xf32> to vector<8x32xf32>
    %60 = math.tanh %59 : vector<8x32xf32>
    %61 = vector.extract_strided_slice %58 {offsets = [0, 0], sizes = [8, 32], strides = [1, 1]} : vector<8x96xf32> to vector<8x32xf32>
    %62 = vector.extract_strided_slice %58 {offsets = [0, 32], sizes = [8, 32], strides = [1, 1]} : vector<8x96xf32> to vector<8x32xf32>
    %63 = vector.extract_strided_slice %58 {offsets = [0, 64], sizes = [8, 32], strides = [1, 1]} : vector<8x96xf32> to vector<8x32xf32>
    %64 = arith.mulf %62, %46 : vector<8x32xf32>
    %65 = arith.mulf %61, %60 : vector<8x32xf32>
    %66 = arith.addf %64, %65 : vector<8x32xf32>
    %67 = math.tanh %66 : vector<8x32xf32>
    %68 = arith.mulf %63, %67 : vector<8x32xf32>
    %69 = arith.addf %49, %68 : vector<8x32xf32>
    %70 = vector.extract_strided_slice %5 {offsets = [0, 384], sizes = [8, 128], strides = [1, 1]} : vector<8x512xf32> to vector<8x128xf32>
    %cst_16 = arith.constant dense<0.000000e+00> : vector<8x128xf32>
    %71 = tpu.matmul %68, %6, %cst_16 {dimension_numbers = #tpu.dot_dimension_numbers<[1], [0], [0], [1], [0, 0, 1, 1], [], []>} : vector<8x32xf32>, vector<32x128xf32>, vector<8x128xf32> -> vector<8x128xf32>
    %72 = arith.addf %70, %71 : vector<8x128xf32>
    %73 = vector.extract_strided_slice %72 {offsets = [0, 0], sizes = [8, 96], strides = [1, 1]} : vector<8x128xf32> to vector<8x96xf32>
    %74 = arith.negf %73 : vector<8x96xf32>
    %75 = math.exp %74 : vector<8x96xf32>
    %cst_17 = arith.constant 1.000000e+00 : f32
    %76 = vector.broadcast %cst_17 : f32 to vector<8x96xf32>
    %77 = arith.addf %76, %75 : vector<8x96xf32>
    %78 = arith.divf %76, %77 : vector<8x96xf32>
    %79 = vector.extract_strided_slice %72 {offsets = [0, 96], sizes = [8, 32], strides = [1, 1]} : vector<8x128xf32> to vector<8x32xf32>
    %80 = math.tanh %79 : vector<8x32xf32>
    %81 = vector.extract_strided_slice %78 {offsets = [0, 0], sizes = [8, 32], strides = [1, 1]} : vector<8x96xf32> to vector<8x32xf32>
    %82 = vector.extract_strided_slice %78 {offsets = [0, 32], sizes = [8, 32], strides = [1, 1]} : vector<8x96xf32> to vector<8x32xf32>
    %83 = vector.extract_strided_slice %78 {offsets = [0, 64], sizes = [8, 32], strides = [1, 1]} : vector<8x96xf32> to vector<8x32xf32>
    %84 = arith.mulf %82, %66 : vector<8x32xf32>
    %85 = arith.mulf %81, %80 : vector<8x32xf32>
    %86 = arith.addf %84, %85 : vector<8x32xf32>
    %87 = math.tanh %86 : vector<8x32xf32>
    %88 = arith.mulf %83, %87 : vector<8x32xf32>
    %89 = arith.addf %69, %88 : vector<8x32xf32>
    %cst_18 = arith.constant 2.500000e-01 : f32
    %90 = vector.broadcast %cst_18 : f32 to vector<8x32xf32>
    %91 = arith.mulf %89, %90 : vector<8x32xf32>
    %c0_19 = arith.constant 0 : index
    %c0_20 = arith.constant 0 : index
    %92 = vector.load %arg5[%c0_19, %c0_20] : memref<8x32xf32, #tpu.memory_space<vmem>>, vector<8x32xf32>
    tpu.vector_store %arg5[%c0_19, %c0_20], %91 {strides = array<i32>} : memref<8x32xf32, #tpu.memory_space<vmem>>, vector<8x32xf32>,
    return
  }
  func.func @transform_0(%arg0: i32) -> (i32, i32) {
    %c0_i32 = arith.constant 0 : i32
    %c0_i32_0 = arith.constant 0 : i32
    return %arg0, %c0_i32 : i32, i32
  }
  func.func @transform_1(%arg0: i32) -> (i32, i32) {
    %c0_i32 = arith.constant 0 : i32
    %c0_i32_0 = arith.constant 0 : i32
    %c0_i32_1 = arith.constant 0 : i32
    return %c0_i32, %c0_i32_0 : i32, i32
  }
  func.func @transform_2(%arg0: i32) -> (i32, i32) {
    %c0_i32 = arith.constant 0 : i32
    %c0_i32_0 = arith.constant 0 : i32
    %c0_i32_1 = arith.constant 0 : i32
    return %c0_i32, %c0_i32_0 : i32, i32
  }
  func.func @transform_3(%arg0: i32) -> (i32, i32) {
    %c0_i32 = arith.constant 0 : i32
    %c0_i32_0 = arith.constant 0 : i32
    %c0_i32_1 = arith.constant 0 : i32
    return %c0_i32, %c0_i32_0 : i32, i32
  }
  func.func @transform_4(%arg0: i32) -> (i32, i32) {
    %c0_i32 = arith.constant 0 : i32
    %c0_i32_0 = arith.constant 0 : i32
    return %arg0, %c0_i32 : i32, i32
  }
}

</mosaic_0001>

<llo_original>
// kernel: tpu_custom_call.1
$region0: #{tpu_custom_call.1}
  #allocation0 [shape = 'u32[]', space=smem, size = 0x4, offset = 0x4, fixed_abs, tag = 'smem constant byte address 0x4 - core index']
  #allocation1 [shape = 'u32[144,128]{1,0:T(1,128)}', space=vmem, size = 0x12000, scoped, tag = 'internal scratch']
  %s0 = inlined_call_operand.hbm [shape: f32[8,128], index: 0, kind: input, shape index: {}]
  %s1 = inlined_call_operand.hbm [shape: f32[128,512], index: 1, kind: input, shape index: {}]
  %s2 = inlined_call_operand.vmem [shape: f32[1,512], index: 2, kind: input, shape index: {}]
  %s3 = inlined_call_operand.hbm [shape: f32[32,128], index: 3, kind: input, shape index: {}]
  %s4 = inlined_call_operand.hbm [shape: f32[8,32], index: 4, kind: output, shape index: {}]
  %s5 = sld [smem:[#allocation0]]
  $region38: #{tpu_custom_call.1} parent=0
    _
  %s7 = ssub.s32 1, %s5
  %s8 = scalar_select 0, %s7, %s5
  $region1: #{tpu_custom_call.1} parent=0
    #allocation2 [shape = 'u8[4096]{0}', space=vmem, size = 0x1000, scoped, tag = 'input window, operand 0, single buffered']
    #allocation3 [shape = 's32[1]{0}', space=sflag, size = 0x4, scoped, tag = 'scoped memory for tpu_custom_call.1']
    #allocation4 [shape = 's32[1]{0}', space=sflag, size = 0x4, scoped, tag = 'scoped memory for tpu_custom_call.1']
    #allocation5 [shape = 'u8[262144]{0}', space=vmem, size = 0x40000, scoped, tag = 'input window, operand 1, single buffered']
    #allocation6 [shape = 's32[1]{0}', space=sflag, size = 0x4, scoped, tag = 'scoped memory for tpu_custom_call.1']
    #allocation7 [shape = 'u8[16384]{0}', space=vmem, size = 0x4000, scoped, tag = 'input window, operand 3, single buffered']
    #allocation8 [shape = 'u8[4096]{0}', space=vmem, size = 0x1000, scoped, tag = 'output window, operand 0, single buffered']
    %9 = vsyncpa [#allocation3], 0
    %10 = vsyncpa [#allocation6], 0
    %11 = vsyncpa [#allocation4], 0
    // Predicated region
    $region2: #{tpu_custom_call.1} parent=1 // pred_check
      _
    $region3: #{tpu_custom_call.1} parent=1 // pred_check_branch
      %13 = sbr.rel (0) target = $region5
    $region4: #{tpu_custom_call.1} parent=1 // pred_region
      %s15 = ssub.s32 128, 128
      %16 = vsyncadd [#allocation3], %s15
      %s18 = sshll.u32 [#allocation2], 4
      %s19 = int_to_ptr.vmem [resolvable:$true] %s18
      %21 = dma.hbm_to_vmem [thread:$0]  %s0, 128, %s19, [#allocation3]
    $region5: #{tpu_custom_call.1} parent=1 // pred_fallthru
      _
    // Predicated region
    $region6: #{tpu_custom_call.1} parent=1 // pred_check
      _
    $region7: #{tpu_custom_call.1} parent=1 // pred_check_branch
      %23 = sbr.rel (0) target = $region9
    $region8: #{tpu_custom_call.1} parent=1 // pred_region
      %s25 = ssub.s32 8192, 8192
      %26 = vsyncadd [#allocation6], %s25
      %s27 = sshll.u32 [#allocation5], 4
      %s28 = int_to_ptr.vmem [resolvable:$true] %s27
      %33 = dma.hbm_to_vmem [thread:$0]  %s1, 8192, %s28, [#allocation6], 512, 512, 32
    $region9: #{tpu_custom_call.1} parent=1 // pred_fallthru
      _
    // Predicated region
    $region10: #{tpu_custom_call.1} parent=1 // pred_check
      _
    $region11: #{tpu_custom_call.1} parent=1 // pred_check_branch
      %35 = sbr.rel (0) target = $region13
    $region12: #{tpu_custom_call.1} parent=1 // pred_region
      _
    $region13: #{tpu_custom_call.1} parent=1 // pred_fallthru
      _
    // Predicated region
    $region14: #{tpu_custom_call.1} parent=1 // pred_check
      _
    $region15: #{tpu_custom_call.1} parent=1 // pred_check_branch
      %37 = sbr.rel (0) target = $region17
    $region16: #{tpu_custom_call.1} parent=1 // pred_region
      %s39 = ssub.s32 512, 512
      %40 = vsyncadd [#allocation6], %s39
      %s41 = sshll.u32 [#allocation7], 4
      %s42 = int_to_ptr.vmem [resolvable:$true] %s41
      %47 = dma.hbm_to_vmem [thread:$0]  %s3, 512, %s42, [#allocation6], 128, 128, 8
    $region17: #{tpu_custom_call.1} parent=1 // pred_fallthru
      _
    // Predicated region
    $region18: #{tpu_custom_call.1} parent=1 // pred_check
      _
    $region19: #{tpu_custom_call.1} parent=1 // pred_check_branch
      %49 = sbr.rel (0) target = $region21
    $region20: #{tpu_custom_call.1} parent=1 // pred_region
      %50 = dma.done [#allocation3], 128
    $region21: #{tpu_custom_call.1} parent=1 // pred_fallthru
      _
    // Predicated region
    $region22: #{tpu_custom_call.1} parent=1 // pred_check
      _
    $region23: #{tpu_custom_call.1} parent=1 // pred_check_branch
      %52 = sbr.rel (0) target = $region25
    $region24: #{tpu_custom_call.1} parent=1 // pred_region
      %53 = dma.done [#allocation6], 8192
    $region25: #{tpu_custom_call.1} parent=1 // pred_fallthru
      _
    // Predicated region
    $region26: #{tpu_custom_call.1} parent=1 // pred_check
      _
    $region27: #{tpu_custom_call.1} parent=1 // pred_check_branch
      %55 = sbr.rel (0) target = $region29
    $region28: #{tpu_custom_call.1} parent=1 // pred_region
      %56 = dma.done [#allocation6], 512
    $region29: #{tpu_custom_call.1} parent=1 // pred_fallthru
      _
    %v57 = vld [vmem:[#allocation2] sm:$0xff]
    %v58 = vld [vmem:[#allocation5] sm:$0xff]
    %v59 = vld [vmem:[#allocation5 + $0x8] sm:$0xff]
    %v60 = vld [vmem:[#allocation5 + $0x10] sm:$0xff]
    %v61 = vld [vmem:[#allocation5 + $0x18] sm:$0xff]
    %v62 = vld [vmem:[#allocation5 + $0x20] sm:$0xff]
    %v63 = vld [vmem:[#allocation5 + $0x28] sm:$0xff]
    %v64 = vld [vmem:[#allocation5 + $0x30] sm:$0xff]
    %v65 = vld [vmem:[#allocation5 + $0x38] sm:$0xff]
    %v66 = vld [vmem:[#allocation5 + $0x40] sm:$0xff]
    %v67 = vld [vmem:[#allocation5 + $0x48] sm:$0xff]
    %v68 = vld [vmem:[#allocation5 + $0x50] sm:$0xff]
    %v69 = vld [vmem:[#allocation5 + $0x58] sm:$0xff]
    %v70 = vld [vmem:[#allocation5 + $0x60] sm:$0xff]
    %v71 = vld [vmem:[#allocation5 + $0x68] sm:$0xff]
    %v72 = vld [vmem:[#allocation5 + $0x70] sm:$0xff]
    %v73 = vld [vmem:[#allocation5 + $0x78] sm:$0xff]
    %v74 = vld [vmem:[#allocation5 + $0x80] sm:$0xff]
    %v75 = vld [vmem:[#allocation5 + $0x88] sm:$0xff]
    %v76 = vld [vmem:[#allocation5 + $0x90] sm:$0xff]
    %v77 = vld [vmem:[#allocation5 + $0x98] sm:$0xff]
    %v78 = vld [vmem:[#allocation5 + $0xa0] sm:$0xff]
    %v79 = vld [vmem:[#allocation5 + $0xa8] sm:$0xff]
    %v80 = vld [vmem:[#allocation5 + $0xb0] sm:$0xff]
    %v81 = vld [vmem:[#allocation5 + $0xb8] sm:$0xff]
    %v82 = vld [vmem:[#allocation5 + $0xc0] sm:$0xff]
    %v83 = vld [vmem:[#allocation5 + $0xc8] sm:$0xff]
    %v84 = vld [vmem:[#allocation5 + $0xd0] sm:$0xff]
    %v85 = vld [vmem:[#allocation5 + $0xd8] sm:$0xff]
    %v86 = vld [vmem:[#allocation5 + $0xe0] sm:$0xff]
    %v87 = vld [vmem:[#allocation5 + $0xe8] sm:$0xff]
    %v88 = vld [vmem:[#allocation5 + $0xf0] sm:$0xff]
    %v89 = vld [vmem:[#allocation5 + $0xf8] sm:$0xff]
    %v90 = vld [vmem:[#allocation5 + $0x100] sm:$0xff]
    %v91 = vld [vmem:[#allocation5 + $0x108] sm:$0xff]
    %v92 = vld [vmem:[#allocation5 + $0x110] sm:$0xff]
    %v93 = vld [vmem:[#allocation5 + $0x118] sm:$0xff]
    %v94 = vld [vmem:[#allocation5 + $0x120] sm:$0xff]
    %v95 = vld [vmem:[#allocation5 + $0x128] sm:$0xff]
    %v96 = vld [vmem:[#allocation5 + $0x130] sm:$0xff]
    %v97 = vld [vmem:[#allocation5 + $0x138] sm:$0xff]
    %v98 = vld [vmem:[#allocation5 + $0x140] sm:$0xff]
    %v99 = vld [vmem:[#allocation5 + $0x148] sm:$0xff]
    %v100 = vld [vmem:[#allocation5 + $0x150] sm:$0xff]
    %v101 = vld [vmem:[#allocation5 + $0x158] sm:$0xff]
    %v102 = vld [vmem:[#allocation5 + $0x160] sm:$0xff]
    %v103 = vld [vmem:[#allocation5 + $0x168] sm:$0xff]
    %v104 = vld [vmem:[#allocation5 + $0x170] sm:$0xff]
    %v105 = vld [vmem:[#allocation5 + $0x178] sm:$0xff]
    %v106 = vld [vmem:[#allocation5 + $0x180] sm:$0xff]
    %v107 = vld [vmem:[#allocation5 + $0x188] sm:$0xff]
    %v108 = vld [vmem:[#allocation5 + $0x190] sm:$0xff]
    %v109 = vld [vmem:[#allocation5 + $0x198] sm:$0xff]
    %v110 = vld [vmem:[#allocation5 + $0x1a0] sm:$0xff]
    %v111 = vld [vmem:[#allocation5 + $0x1a8] sm:$0xff]
    %v112 = vld [vmem:[#allocation5 + $0x1b0] sm:$0xff]
    %v113 = vld [vmem:[#allocation5 + $0x1b8] sm:$0xff]
    %v114 = vld [vmem:[#allocation5 + $0x1c0] sm:$0xff]
    %v115 = vld [vmem:[#allocation5 + $0x1c8] sm:$0xff]
    %v116 = vld [vmem:[#allocation5 + $0x1d0] sm:$0xff]
    %v117 = vld [vmem:[#allocation5 + $0x1d8] sm:$0xff]
    %v118 = vld [vmem:[#allocation5 + $0x1e0] sm:$0xff]
    %v119 = vld [vmem:[#allocation5 + $0x1e8] sm:$0xff]
    %v120 = vld [vmem:[#allocation5 + $0x1f0] sm:$0xff]
    %v121 = vld [vmem:[#allocation5 + $0x1f8] sm:$0xff]
    %v122 = vld [vmem:[%s2] sm:$0xf]
    %v124 = vlaneseq
    %v125 = vshrl.u32 %v124, 7
    %v126 = vsub.s32 0, %v125
    %v127 = vrot.slane %v122, %v126
    %v128 = vlaneseq
    %v129 = vshrl.u32 %v128, 7
    %v130 = vsub.s32 1, %v129
    %v131 = vrot.slane %v122, %v130
    %v132 = vlaneseq
    %v133 = vshrl.u32 %v132, 7
    %v134 = vsub.s32 2, %v133
    %v135 = vrot.slane %v122, %v134
    %v136 = vlaneseq
    %v137 = vshrl.u32 %v136, 7
    %v138 = vsub.s32 3, %v137
    %v139 = vrot.slane %v122, %v138
    %144 = vmatprep.subr.mxu0 %v59
    %145 = vmatpush1.msra.mxu0 %v58
    %146 = vmatprep.subr.mxu0 %v63
    %147 = vmatpush1.msra.mxu0 %v62
    %148 = vmatprep.subr.mxu0 %v67
    %149 = vmatpush1.msra.mxu0 %v66
    %150 = vmatprep.subr.mxu0 %v71
    %151 = vmatpush1.msra.mxu0 %v70
    %152 = vmatprep.subr.mxu0 %v75
    %153 = vmatpush1.msra.mxu0 %v74
    %154 = vmatprep.subr.mxu0 %v79
    %155 = vmatpush1.msra.mxu0 %v78
    %156 = vmatprep.subr.mxu0 %v83
    %157 = vmatpush1.msra.mxu0 %v82
    %158 = vmatprep.subr.mxu0 %v87
    %159 = vmatpush1.msra.mxu0 %v86
    %160 = vmatprep.subr.mxu0 %v91
    %161 = vmatpush1.msra.mxu0 %v90
    %162 = vmatprep.subr.mxu0 %v95
    %163 = vmatpush1.msra.mxu0 %v94
    %164 = vmatprep.subr.mxu0 %v99
    %165 = vmatpush1.msra.mxu0 %v98
    %166 = vmatprep.subr.mxu0 %v103
    %167 = vmatpush1.msra.mxu0 %v102
    %168 = vmatprep.subr.mxu0 %v107
    %169 = vmatpush1.msra.mxu0 %v106
    %170 = vmatprep.subr.mxu0 %v111
    %171 = vmatpush1.msra.mxu0 %v110
    %172 = vmatprep.subr.mxu0 %v115
    %173 = vmatpush1.msra.mxu0 %v114
    %174 = vmatprep.subr.mxu0 %v119
    %175 = vmatpush1.msra.mxu0 %v118
    %176 = vmatprep.subr.mxu0 0.0
    %177 = vmatpush1.msra.mxu0 0.0
    %178 = vmatprep.subr.mxu0 0.0
    %179 = vmatpush1.msra.mxu0 0.0
    %180 = vmatprep.subr.mxu0 0.0
    %181 = vmatpush1.msra.mxu0 0.0
    %182 = vmatprep.subr.mxu0 0.0
    %183 = vmatpush1.msra.mxu0 0.0
    %184 = vmatprep.subr.mxu0 0.0
    %185 = vmatpush1.msra.mxu0 0.0
    %186 = vmatprep.subr.mxu0 0.0
    %187 = vmatpush1.msra.mxu0 0.0
    %188 = vmatprep.subr.mxu0 0.0
    %189 = vmatpush1.msra.mxu0 0.0
    %190 = vmatprep.subr.mxu0 0.0
    %191 = vmatpush1.msra.mxu0 0.0
    %192 = vmatprep.subr.mxu0 0.0
    %193 = vmatpush1.msra.mxu0 0.0
    %194 = vmatprep.subr.mxu0 0.0
    %195 = vmatpush1.msra.mxu0 0.0
    %196 = vmatprep.subr.mxu0 0.0
    %197 = vmatpush1.msra.mxu0 0.0
    %198 = vmatprep.subr.mxu0 0.0
    %199 = vmatpush1.msra.mxu0 0.0
    %200 = vmatprep.subr.mxu0 0.0
    %201 = vmatpush1.msra.mxu0 0.0
    %202 = vmatprep.subr.mxu0 0.0
    %203 = vmatpush1.msra.mxu0 0.0
    %204 = vmatprep.subr.mxu0 0.0
    %205 = vmatpush1.msra.mxu0 0.0
    %206 = vmatprep.subr.mxu0 0.0
    %207 = vmatpush1.msra.mxu0 0.0
    %208 = vmatprep.mubr.f32.mxu0 0.0
    %209 = vmatmul.mubr.f32.gmra.mrb[0].mxu0 %v57
    %v210 = vpop.f32.mrb[0].mxu0
    %v211 = vadd.f32 %v127, %v210
    %v212 = vpop.f32.mrb[0].mxu0
    %v213 = vadd.f32 %v131, %v212
    %214 = vdwg.mxu0
    %215 = vmatprep.subr.mxu0 %v61
    %216 = vmatpush1.msra.mxu0 %v60
    %217 = vmatprep.subr.mxu0 %v65
    %218 = vmatpush1.msra.mxu0 %v64
    %219 = vmatprep.subr.mxu0 %v69
    %220 = vmatpush1.msra.mxu0 %v68
    %221 = vmatprep.subr.mxu0 %v73
    %222 = vmatpush1.msra.mxu0 %v72
    %223 = vmatprep.subr.mxu0 %v77
    %224 = vmatpush1.msra.mxu0 %v76
    %225 = vmatprep.subr.mxu0 %v81
    %226 = vmatpush1.msra.mxu0 %v80
    %227 = vmatprep.subr.mxu0 %v85
    %228 = vmatpush1.msra.mxu0 %v84
    %229 = vmatprep.subr.mxu0 %v89
    %230 = vmatpush1.msra.mxu0 %v88
    %231 = vmatprep.subr.mxu0 %v93
    %232 = vmatpush1.msra.mxu0 %v92
    %233 = vmatprep.subr.mxu0 %v97
    %234 = vmatpush1.msra.mxu0 %v96
    %235 = vmatprep.subr.mxu0 %v101
    %236 = vmatpush1.msra.mxu0 %v100
    %237 = vmatprep.subr.mxu0 %v105
    %238 = vmatpush1.msra.mxu0 %v104
    %239 = vmatprep.subr.mxu0 %v109
    %240 = vmatpush1.msra.mxu0 %v108
    %241 = vmatprep.subr.mxu0 %v113
    %242 = vmatpush1.msra.mxu0 %v112
    %243 = vmatprep.subr.mxu0 %v117
    %244 = vmatpush1.msra.mxu0 %v116
    %245 = vmatprep.subr.mxu0 %v121
    %246 = vmatpush1.msra.mxu0 %v120
    %247 = vmatprep.subr.mxu0 0.0
    %248 = vmatpush1.msra.mxu0 0.0
    %249 = vmatprep.subr.mxu0 0.0
    %250 = vmatpush1.msra.mxu0 0.0
    %251 = vmatprep.subr.mxu0 0.0
    %252 = vmatpush1.msra.mxu0 0.0
    %253 = vmatprep.subr.mxu0 0.0
    %254 = vmatpush1.msra.mxu0 0.0
    %255 = vmatprep.subr.mxu0 0.0
    %256 = vmatpush1.msra.mxu0 0.0
    %257 = vmatprep.subr.mxu0 0.0
    %258 = vmatpush1.msra.mxu0 0.0
    %259 = vmatprep.subr.mxu0 0.0
    %260 = vmatpush1.msra.mxu0 0.0
    %261 = vmatprep.subr.mxu0 0.0
    %262 = vmatpush1.msra.mxu0 0.0
    %263 = vmatprep.subr.mxu0 0.0
    %264 = vmatpush1.msra.mxu0 0.0
    %265 = vmatprep.subr.mxu0 0.0
    %266 = vmatpush1.msra.mxu0 0.0
    %267 = vmatprep.subr.mxu0 0.0
    %268 = vmatpush1.msra.mxu0 0.0
    %269 = vmatprep.subr.mxu0 0.0
    %270 = vmatpush1.msra.mxu0 0.0
    %271 = vmatprep.subr.mxu0 0.0
    %272 = vmatpush1.msra.mxu0 0.0
    %273 = vmatprep.subr.mxu0 0.0
    %274 = vmatpush1.msra.mxu0 0.0
    %275 = vmatprep.subr.mxu0 0.0
    %276 = vmatpush1.msra.mxu0 0.0
    %277 = vmatprep.subr.mxu0 0.0
    %278 = vmatpush1.msra.mxu0 0.0
    %279 = vmatprep.mubr.f32.mxu0 0.0
    %280 = vmatmul.mubr.f32.gmra.mrb[0].mxu0 %v57
    %v281 = vpop.f32.mrb[0].mxu0
    %v282 = vadd.f32 %v135, %v281
    %v283 = vpop.f32.mrb[0].mxu0
    %v284 = vadd.f32 %v139, %v283
    %285 = vdwg.mxu0
    %v286 = vld [vmem:[#allocation7] sm:$0xff]
    %v287 = vld [vmem:[#allocation7 + $0x8] sm:$0xff]
    %v288 = vld [vmem:[#allocation7 + $0x10] sm:$0xff]
    %v289 = vld [vmem:[#allocation7 + $0x18] sm:$0xff]
    %vm290 = vcmask 261120
    %v292 = vsel %vm290, 0.0, 0
    %294 = vmatprep.subr.mxu0 0.0
    %295 = vmatpush1.msra.mxu0 %v286
    %296 = vmatprep.subr.mxu0 0.0
    %297 = vmatpush1.msra.mxu0 %v287
    %298 = vmatprep.subr.mxu0 0.0
    %299 = vmatpush1.msra.mxu0 %v288
    %300 = vmatprep.subr.mxu0 0.0
    %301 = vmatpush1.msra.mxu0 %v289
    %302 = vmatprep.subr.mxu0 0.0
    %303 = vmatpush1.msra.mxu0 0.0
    %304 = vmatprep.subr.mxu0 0.0
    %305 = vmatpush1.msra.mxu0 0.0
    %306 = vmatprep.subr.mxu0 0.0
    %307 = vmatpush1.msra.mxu0 0.0
    %308 = vmatprep.subr.mxu0 0.0
    %309 = vmatpush1.msra.mxu0 0.0
    %310 = vmatprep.subr.mxu0 0.0
    %311 = vmatpush1.msra.mxu0 0.0
    %312 = vmatprep.subr.mxu0 0.0
    %313 = vmatpush1.msra.mxu0 0.0
    %314 = vmatprep.subr.mxu0 0.0
    %315 = vmatpush1.msra.mxu0 0.0
    %316 = vmatprep.subr.mxu0 0.0
    %317 = vmatpush1.msra.mxu0 0.0
    %318 = vmatprep.subr.mxu0 0.0
    %319 = vmatpush1.msra.mxu0 0.0
    %320 = vmatprep.subr.mxu0 0.0
    %321 = vmatpush1.msra.mxu0 0.0
    %322 = vmatprep.subr.mxu0 0.0
    %323 = vmatpush1.msra.mxu0 0.0
    %324 = vmatprep.subr.mxu0 0.0
    %325 = vmatpush1.msra.mxu0 0.0
    %326 = vmatprep.subr.mxu0 0.0
    %327 = vmatpush1.msra.mxu0 0.0
    %328 = vmatprep.subr.mxu0 0.0
    %329 = vmatpush1.msra.mxu0 0.0
    %330 = vmatprep.subr.mxu0 0.0
    %331 = vmatpush1.msra.mxu0 0.0
    %332 = vmatprep.subr.mxu0 0.0
    %333 = vmatpush1.msra.mxu0 0.0
    %334 = vmatprep.subr.mxu0 0.0
    %335 = vmatpush1.msra.mxu0 0.0
    %336 = vmatprep.subr.mxu0 0.0
    %337 = vmatpush1.msra.mxu0 0.0
    %338 = vmatprep.subr.mxu0 0.0
    %339 = vmatpush1.msra.mxu0 0.0
    %340 = vmatprep.subr.mxu0 0.0
    %341 = vmatpush1.msra.mxu0 0.0
    %342 = vmatprep.subr.mxu0 0.0
    %343 = vmatpush1.msra.mxu0 0.0
    %344 = vmatprep.subr.mxu0 0.0
    %345 = vmatpush1.msra.mxu0 0.0
    %346 = vmatprep.subr.mxu0 0.0
    %347 = vmatpush1.msra.mxu0 0.0
    %348 = vmatprep.subr.mxu0 0.0
    %349 = vmatpush1.msra.mxu0 0.0
    %350 = vmatprep.subr.mxu0 0.0
    %351 = vmatpush1.msra.mxu0 0.0
    %352 = vmatprep.subr.mxu0 0.0
    %353 = vmatpush1.msra.mxu0 0.0
    %354 = vmatprep.subr.mxu0 0.0
    %355 = vmatpush1.msra.mxu0 0.0
    %356 = vmatprep.subr.mxu0 0.0
    %357 = vmatpush1.msra.mxu0 0.0
    %358 = vmatprep.mubr.f32.mxu0 0.0
    %359 = vmatmul.mubr.f32.gmra.mrb[0].mxu0 %v292
    %v360 = vpop.f32.mrb[0].mxu0
    %v361 = vadd.f32 0.0, %v360
    %v362 = vpop.f32.mrb[0].mxu0
    %363 = vdwg.mxu0
    %v364 = vadd.f32 %v211, %v361
    %v365 = vxor.u32 %v364, 2147483648
    %v366 = vmul.f32 %v365, 1.442695
    %v367 = vpow.pop %v366
    %v368 = vadd.f32 %v367, 1.0
    %v369 = vrcp.pop %v368
    %v370 = vmul.f32 1.0, %v369
    %v371 = vtanh.pop %v364
    %v372 = vmul.f32 %v370, 0.0
    %374 = vrot.lane.b32.xlu0 %v371, 32
    %v375 = vpop.permute.xlu0 %374
    %v377 = vmul.f32 %v370, %v375
    %379 = vrot.lane.b32.xlu0 %v377, 32
    %v380 = vpop.permute.xlu0 %379
    %v382 = vadd.f32 %v372, %v380
    %v383 = vtanh.pop %v382
    %385 = vrot.lane.b32.xlu0 %v383, 32
    %v386 = vpop.permute.xlu0 %385
    %v388 = vmul.f32 %v370, %v386
    %v389 = vadd.f32 %v388, 0.0
    %391 = vrot.lane.b32.xlu0 %v388, 64
    %v392 = vpop.permute.xlu0 %391
    %v393 = vsel %vm290, %v392, 0
    %395 = vmatprep.subr.mxu0 0.0
    %396 = vmatpush1.msra.mxu0 %v286
    %397 = vmatprep.subr.mxu0 0.0
    %398 = vmatpush1.msra.mxu0 %v287
    %399 = vmatprep.subr.mxu0 0.0
    %400 = vmatpush1.msra.mxu0 %v288
    %401 = vmatprep.subr.mxu0 0.0
    %402 = vmatpush1.msra.mxu0 %v289
    %403 = vmatprep.subr.mxu0 0.0
    %404 = vmatpush1.msra.mxu0 0.0
    %405 = vmatprep.subr.mxu0 0.0
    %406 = vmatpush1.msra.mxu0 0.0
    %407 = vmatprep.subr.mxu0 0.0
    %408 = vmatpush1.msra.mxu0 0.0
    %409 = vmatprep.subr.mxu0 0.0
    %410 = vmatpush1.msra.mxu0 0.0
    %411 = vmatprep.subr.mxu0 0.0
    %412 = vmatpush1.msra.mxu0 0.0
    %413 = vmatprep.subr.mxu0 0.0
    %414 = vmatpush1.msra.mxu0 0.0
    %415 = vmatprep.subr.mxu0 0.0
    %416 = vmatpush1.msra.mxu0 0.0
    %417 = vmatprep.subr.mxu0 0.0
    %418 = vmatpush1.msra.mxu0 0.0
    %419 = vmatprep.subr.mxu0 0.0
    %420 = vmatpush1.msra.mxu0 0.0
    %421 = vmatprep.subr.mxu0 0.0
    %422 = vmatpush1.msra.mxu0 0.0
    %423 = vmatprep.subr.mxu0 0.0
    %424 = vmatpush1.msra.mxu0 0.0
    %425 = vmatprep.subr.mxu0 0.0
    %426 = vmatpush1.msra.mxu0 0.0
    %427 = vmatprep.subr.mxu0 0.0
    %428 = vmatpush1.msra.mxu0 0.0
    %429 = vmatprep.subr.mxu0 0.0
    %430 = vmatpush1.msra.mxu0 0.0
    %431 = vmatprep.subr.mxu0 0.0
    %432 = vmatpush1.msra.mxu0 0.0
    %433 = vmatprep.subr.mxu0 0.0
    %434 = vmatpush1.msra.mxu0 0.0
    %435 = vmatprep.subr.mxu0 0.0
    %436 = vmatpush1.msra.mxu0 0.0
    %437 = vmatprep.subr.mxu0 0.0
    %438 = vmatpush1.msra.mxu0 0.0
    %439 = vmatprep.subr.mxu0 0.0
    %440 = vmatpush1.msra.mxu0 0.0
    %441 = vmatprep.subr.mxu0 0.0
    %442 = vmatpush1.msra.mxu0 0.0
    %443 = vmatprep.subr.mxu0 0.0
    %444 = vmatpush1.msra.mxu0 0.0
    %445 = vmatprep.subr.mxu0 0.0
    %446 = vmatpush1.msra.mxu0 0.0
    %447 = vmatprep.subr.mxu0 0.0
    %448 = vmatpush1.msra.mxu0 0.0
    %449 = vmatprep.subr.mxu0 0.0
    %450 = vmatpush1.msra.mxu0 0.0
    %451 = vmatprep.subr.mxu0 0.0
    %452 = vmatpush1.msra.mxu0 0.0
    %453 = vmatprep.subr.mxu0 0.0
    %454 = vmatpush1.msra.mxu0 0.0
    %455 = vmatprep.subr.mxu0 0.0
    %456 = vmatpush1.msra.mxu0 0.0
    %457 = vmatprep.subr.mxu0 0.0
    %458 = vmatpush1.msra.mxu0 0.0
    %459 = vmatprep.mubr.f32.mxu0 0.0
    %460 = vmatmul.mubr.f32.gmra.mrb[0].mxu0 %v393
    %v461 = vpop.f32.mrb[0].mxu0
    %v462 = vadd.f32 0.0, %v461
    %v463 = vpop.f32.mrb[0].mxu0
    %464 = vdwg.mxu0
    %v465 = vadd.f32 %v213, %v462
    %v466 = vxor.u32 %v465, 2147483648
    %v467 = vmul.f32 %v466, 1.442695
    %v468 = vpow.pop %v467
    %v469 = vadd.f32 %v468, 1.0
    %v470 = vrcp.pop %v469
    %v471 = vmul.f32 1.0, %v470
    %v472 = vtanh.pop %v465
    %v473 = vmul.f32 %v471, %v382
    %475 = vrot.lane.b32.xlu0 %v472, 32
    %v476 = vpop.permute.xlu0 %475
    %v478 = vmul.f32 %v471, %v476
    %480 = vrot.lane.b32.xlu0 %v478, 32
    %v481 = vpop.permute.xlu0 %480
    %v483 = vadd.f32 %v473, %v481
    %v484 = vtanh.pop %v483
    %486 = vrot.lane.b32.xlu0 %v484, 32
    %v487 = vpop.permute.xlu0 %486
    %v489 = vmul.f32 %v471, %v487
    %v490 = vadd.f32 %v389, %v489
    %492 = vrot.lane.b32.xlu0 %v489, 64
    %v493 = vpop.permute.xlu0 %492
    %v494 = vsel %vm290, %v493, 0
    %496 = vmatprep.subr.mxu0 0.0
    %497 = vmatpush1.msra.mxu0 %v286
    %498 = vmatprep.subr.mxu0 0.0
    %499 = vmatpush1.msra.mxu0 %v287
    %500 = vmatprep.subr.mxu0 0.0
    %501 = vmatpush1.msra.mxu0 %v288
    %502 = vmatprep.subr.mxu0 0.0
    %503 = vmatpush1.msra.mxu0 %v289
    %504 = vmatprep.subr.mxu0 0.0
    %505 = vmatpush1.msra.mxu0 0.0
    %506 = vmatprep.subr.mxu0 0.0
    %507 = vmatpush1.msra.mxu0 0.0
    %508 = vmatprep.subr.mxu0 0.0
    %509 = vmatpush1.msra.mxu0 0.0
    %510 = vmatprep.subr.mxu0 0.0
    %511 = vmatpush1.msra.mxu0 0.0
    %512 = vmatprep.subr.mxu0 0.0
    %513 = vmatpush1.msra.mxu0 0.0
    %514 = vmatprep.subr.mxu0 0.0
    %515 = vmatpush1.msra.mxu0 0.0
    %516 = vmatprep.subr.mxu0 0.0
    %517 = vmatpush1.msra.mxu0 0.0
    %518 = vmatprep.subr.mxu0 0.0
    %519 = vmatpush1.msra.mxu0 0.0
    %520 = vmatprep.subr.mxu0 0.0
    %521 = vmatpush1.msra.mxu0 0.0
    %522 = vmatprep.subr.mxu0 0.0
    %523 = vmatpush1.msra.mxu0 0.0
    %524 = vmatprep.subr.mxu0 0.0
    %525 = vmatpush1.msra.mxu0 0.0
    %526 = vmatprep.subr.mxu0 0.0
    %527 = vmatpush1.msra.mxu0 0.0
    %528 = vmatprep.subr.mxu0 0.0
    %529 = vmatpush1.msra.mxu0 0.0
    %530 = vmatprep.subr.mxu0 0.0
    %531 = vmatpush1.msra.mxu0 0.0
    %532 = vmatprep.subr.mxu0 0.0
    %533 = vmatpush1.msra.mxu0 0.0
    %534 = vmatprep.subr.mxu0 0.0
    %535 = vmatpush1.msra.mxu0 0.0
    %536 = vmatprep.subr.mxu0 0.0
    %537 = vmatpush1.msra.mxu0 0.0
    %538 = vmatprep.subr.mxu0 0.0
    %539 = vmatpush1.msra.mxu0 0.0
    %540 = vmatprep.subr.mxu0 0.0
    %541 = vmatpush1.msra.mxu0 0.0
    %542 = vmatprep.subr.mxu0 0.0
    %543 = vmatpush1.msra.mxu0 0.0
    %544 = vmatprep.subr.mxu0 0.0
    %545 = vmatpush1.msra.mxu0 0.0
    %546 = vmatprep.subr.mxu0 0.0
    %547 = vmatpush1.msra.mxu0 0.0
    %548 = vmatprep.subr.mxu0 0.0
    %549 = vmatpush1.msra.mxu0 0.0
    %550 = vmatprep.subr.mxu0 0.0
    %551 = vmatpush1.msra.mxu0 0.0
    %552 = vmatprep.subr.mxu0 0.0
    %553 = vmatpush1.msra.mxu0 0.0
    %554 = vmatprep.subr.mxu0 0.0
    %555 = vmatpush1.msra.mxu0 0.0
    %556 = vmatprep.subr.mxu0 0.0
    %557 = vmatpush1.msra.mxu0 0.0
    %558 = vmatprep.subr.mxu0 0.0
    %559 = vmatpush1.msra.mxu0 0.0
    %560 = vmatprep.mubr.f32.mxu0 0.0
    %561 = vmatmul.mubr.f32.gmra.mrb[0].mxu0 %v494
    %v562 = vpop.f32.mrb[0].mxu0
    %v563 = vadd.f32 0.0, %v562
    %v564 = vpop.f32.mrb[0].mxu0
    %565 = vdwg.mxu0
    %v566 = vadd.f32 %v282, %v563
    %v567 = vxor.u32 %v566, 2147483648
    %v568 = vmul.f32 %v567, 1.442695
    %v569 = vpow.pop %v568
    %v570 = vadd.f32 %v569, 1.0
    %v571 = vrcp.pop %v570
    %v572 = vmul.f32 1.0, %v571
    %v573 = vtanh.pop %v566
    %v574 = vmul.f32 %v572, %v483
    %576 = vrot.lane.b32.xlu0 %v573, 32
    %v577 = vpop.permute.xlu0 %576
    %v579 = vmul.f32 %v572, %v577
    %581 = vrot.lane.b32.xlu0 %v579, 32
    %v582 = vpop.permute.xlu0 %581
    %v584 = vadd.f32 %v574, %v582
    %v585 = vtanh.pop %v584
    %587 = vrot.lane.b32.xlu0 %v585, 32
    %v588 = vpop.permute.xlu0 %587
    %v590 = vmul.f32 %v572, %v588
    %v591 = vadd.f32 %v490, %v590
    %593 = vrot.lane.b32.xlu0 %v590, 64
    %v594 = vpop.permute.xlu0 %593
    %v595 = vsel %vm290, %v594, 0
    %597 = vmatprep.subr.mxu0 0.0
    %598 = vmatpush1.msra.mxu0 %v286
    %599 = vmatprep.subr.mxu0 0.0
    %600 = vmatpush1.msra.mxu0 %v287
    %601 = vmatprep.subr.mxu0 0.0
    %602 = vmatpush1.msra.mxu0 %v288
    %603 = vmatprep.subr.mxu0 0.0
    %604 = vmatpush1.msra.mxu0 %v289
    %605 = vmatprep.subr.mxu0 0.0
    %606 = vmatpush1.msra.mxu0 0.0
    %607 = vmatprep.subr.mxu0 0.0
    %608 = vmatpush1.msra.mxu0 0.0
    %609 = vmatprep.subr.mxu0 0.0
    %610 = vmatpush1.msra.mxu0 0.0
    %611 = vmatprep.subr.mxu0 0.0
    %612 = vmatpush1.msra.mxu0 0.0
    %613 = vmatprep.subr.mxu0 0.0
    %614 = vmatpush1.msra.mxu0 0.0
    %615 = vmatprep.subr.mxu0 0.0
    %616 = vmatpush1.msra.mxu0 0.0
    %617 = vmatprep.subr.mxu0 0.0
    %618 = vmatpush1.msra.mxu0 0.0
    %619 = vmatprep.subr.mxu0 0.0
    %620 = vmatpush1.msra.mxu0 0.0
    %621 = vmatprep.subr.mxu0 0.0
    %622 = vmatpush1.msra.mxu0 0.0
    %623 = vmatprep.subr.mxu0 0.0
    %624 = vmatpush1.msra.mxu0 0.0
    %625 = vmatprep.subr.mxu0 0.0
    %626 = vmatpush1.msra.mxu0 0.0
    %627 = vmatprep.subr.mxu0 0.0
    %628 = vmatpush1.msra.mxu0 0.0
    %629 = vmatprep.subr.mxu0 0.0
    %630 = vmatpush1.msra.mxu0 0.0
    %631 = vmatprep.subr.mxu0 0.0
    %632 = vmatpush1.msra.mxu0 0.0
    %633 = vmatprep.subr.mxu0 0.0
    %634 = vmatpush1.msra.mxu0 0.0
    %635 = vmatprep.subr.mxu0 0.0
    %636 = vmatpush1.msra.mxu0 0.0
    %637 = vmatprep.subr.mxu0 0.0
    %638 = vmatpush1.msra.mxu0 0.0
    %639 = vmatprep.subr.mxu0 0.0
    %640 = vmatpush1.msra.mxu0 0.0
    %641 = vmatprep.subr.mxu0 0.0
    %642 = vmatpush1.msra.mxu0 0.0
    %643 = vmatprep.subr.mxu0 0.0
    %644 = vmatpush1.msra.mxu0 0.0
    %645 = vmatprep.subr.mxu0 0.0
    %646 = vmatpush1.msra.mxu0 0.0
    %647 = vmatprep.subr.mxu0 0.0
    %648 = vmatpush1.msra.mxu0 0.0
    %649 = vmatprep.subr.mxu0 0.0
    %650 = vmatpush1.msra.mxu0 0.0
    %651 = vmatprep.subr.mxu0 0.0
    %652 = vmatpush1.msra.mxu0 0.0
    %653 = vmatprep.subr.mxu0 0.0
    %654 = vmatpush1.msra.mxu0 0.0
    %655 = vmatprep.subr.mxu0 0.0
    %656 = vmatpush1.msra.mxu0 0.0
    %657 = vmatprep.subr.mxu0 0.0
    %658 = vmatpush1.msra.mxu0 0.0
    %659 = vmatprep.subr.mxu0 0.0
    %660 = vmatpush1.msra.mxu0 0.0
    %661 = vmatprep.mubr.f32.mxu0 0.0
    %662 = vmatmul.mubr.f32.gmra.mrb[0].mxu0 %v595
    %v663 = vpop.f32.mrb[0].mxu0
    %v664 = vadd.f32 0.0, %v663
    %v665 = vpop.f32.mrb[0].mxu0
    %666 = vdwg.mxu0
    %v667 = vadd.f32 %v284, %v664
    %v668 = vxor.u32 %v667, 2147483648
    %v669 = vmul.f32 %v668, 1.442695
    %v670 = vpow.pop %v669
    %v671 = vadd.f32 %v670, 1.0
    %v672 = vrcp.pop %v671
    %v673 = vmul.f32 1.0, %v672
    %v674 = vtanh.pop %v667
    %v675 = vmul.f32 %v673, %v584
    %677 = vrot.lane.b32.xlu0 %v674, 32
    %v678 = vpop.permute.xlu0 %677
    %v680 = vmul.f32 %v673, %v678
    %682 = vrot.lane.b32.xlu0 %v680, 32
    %v683 = vpop.permute.xlu0 %682
    %v685 = vadd.f32 %v675, %v683
    %v686 = vtanh.pop %v685
    %688 = vrot.lane.b32.xlu0 %v686, 32
    %v689 = vpop.permute.xlu0 %688
    %v691 = vmul.f32 %v673, %v689
    %v692 = vadd.f32 %v591, %v691
    %v693 = vmul.f32 %v692, 0.25
    %695 = vrot.lane.b32.xlu0 %v693, 64
    %v696 = vpop.permute.xlu0 %695
    %698 = vst.msk [vmem:[#allocation8] sm:$0xff] %vm290, %v696
    // Predicated region
    $region30: #{tpu_custom_call.1} parent=1 // pred_check
      _
    $region31: #{tpu_custom_call.1} parent=1 // pred_check_branch
      %700 = sbr.rel (0) target = $region33
    $region32: #{tpu_custom_call.1} parent=1 // pred_region
      %s702 = ssub.s32 128, 128
      %703 = vsyncadd [#allocation4], %s702
      %s705 = sshll.u32 [#allocation8], 4
      %s706 = int_to_ptr.vmem [resolvable:$true] %s705
      %708 = dma.vmem_to_hbm [thread:$0]  %s706, 128, %s4, [#allocation4]
    $region33: #{tpu_custom_call.1} parent=1 // pred_fallthru
      _
    // Predicated region
    $region34: #{tpu_custom_call.1} parent=1 // pred_check
      _
    $region35: #{tpu_custom_call.1} parent=1 // pred_check_branch
      %710 = sbr.rel (0) target = $region37
    $region36: #{tpu_custom_call.1} parent=1 // pred_region
      %711 = dma.done [#allocation4], 128
    $region37: #{tpu_custom_call.1} parent=1 // pred_fallthru
      _
    %712 = vsyncpa [#allocation3], 1
    %713 = vsyncpa [#allocation6], 1
    %714 = vsyncpa [#allocation4], 1

</llo_original>
